<compile_context>
chip_gen: v5e
topology: v5e:2x2
jax: 0.10.0
libtpu: 0.0.40
codegen_flags: <defaults>
</compile_context>

<pallas_src>
import functools

import numpy as np
import jax
import jax.numpy as jnp
from jax import lax
from jax.experimental import pallas as pl
from jax.experimental.pallas import tpu as pltpu

BN_EPS = 1e-5
# Tap offsets (dy, dx) = (ky - 1, kx - 1), row-major -> index t == ky * 3 + kx.
_TAPS = tuple((dy, dx) for dy in (-1, 0, 1) for dx in (-1, 0, 1))


# --------------------------------------------------------------------------
# pltpu.roll convention probe (resolved once, eagerly, at prepare time).
# --------------------------------------------------------------------------

def _roll_probe_kernel(x_ref, o_ref):
    o_ref[...] = pltpu.roll(x_ref[...], 1, 1)


@functools.lru_cache(maxsize=None)
def _roll_matches_numpy():
    """True if pltpu.roll(x, s, ax) == jnp.roll(x, s, ax) (out[i] = in[i - s])."""
    x = jnp.arange(8 * 128, dtype=jnp.float32).reshape(8, 128)
    y = pl.pallas_call(
        _roll_probe_kernel,
        out_shape=jax.ShapeDtypeStruct((8, 128), jnp.float32),
    )(x)
    y = np.asarray(jax.block_until_ready(y))
    xn = np.asarray(x)
    if np.array_equal(y, np.roll(xn, 1, axis=1)):
        return True
    if np.array_equal(y, np.roll(xn, -1, axis=1)):
        return False
    raise RuntimeError("unexpected pltpu.roll semantics")


def _lane_roll_shift(s, P):
    """Static roll amount so rolled[..., p] == x[..., (p + s) % P]."""
    if _roll_matches_numpy():
        return (-s) % P
    return s % P


# --------------------------------------------------------------------------
# Fused clique-block kernel (stem + stage1 + stage2 + both GAPs, one image/step)
# --------------------------------------------------------------------------

def _fused_block_kernel(x_ref, *rest, H, W, lane_shifts, plan, copy_x, nin,
                        s2_start, s2_rows):
    """One grid step == one image.

    x_ref: (Cx, P) bf16   block input (raw image for block 1, else prev transition)
    rest:  [w9_0, shift_0, ..., w9_{n-1}, shift_{n-1},    # per-conv-layer params
            s2_ref (s2_rows, P) bf16,                     # outputs
            gapx_ref (nin, 1) f32, gaps2_ref (s2_rows, 1) f32,
            buf_ref (nin + 2*L*f, P) bf16]                # VMEM scratch
    plan:  tuple of (from_x, in_start, in_size, out_start, out_size, roll_out)
    """
    n_layers = len(plan)
    w_refs = rest[0:2 * n_layers:2]
    sh_refs = rest[1:2 * n_layers:2]
    s2_ref, gapx_ref, gaps2_ref = rest[2 * n_layers:2 * n_layers + 3]
    buf_ref = rest[2 * n_layers + 3]
    P = H * W

    # Border-validity masks, built ONCE per image and reused by every layer/tap.
    pos = lax.broadcasted_iota(jnp.int32, (1, P), 1)
    py = pos // W
    px = pos % W
    masks = []
    for dy, dx in _TAPS:
        if dy == 0 and dx == 0:
            masks.append(None)
        else:
            masks.append((py + dy >= 0) & (py + dy < H) &
                         (px + dx >= 0) & (px + dx < W))

    def conv3x3(x_bf, w_ref, roll_out):
        acc = None
        for t in range(9):
            if roll_out:
                # Dot on the un-shifted input; roll + mask the (Cout, P) result.
                # (Mask AFTER the roll — it depends only on the output position.)
                y = jnp.dot(w_ref[t], x_bf, preferred_element_type=jnp.float32)
                if masks[t] is not None:
                    y = pltpu.roll(y, lane_shifts[t], 1)
                    y = jnp.where(masks[t], y, jnp.zeros_like(y))
            else:
                # Input-side roll (used only when Cin < Cout, i.e. the stem).
                if masks[t] is None:
                    xt = x_bf
                else:
                    xt = pltpu.roll(x_bf, lane_shifts[t], 1)
                    xt = jnp.where(masks[t], xt, jnp.zeros_like(xt))
                y = jnp.dot(w_ref[t], xt, preferred_element_type=jnp.float32)
            acc = y if acc is None else acc + y   # local accumulation (no VMEM RMW)
        return acc

    if copy_x:
        buf_ref[pl.ds(0, nin), :] = x_ref[...]

    for li, (from_x, in_start, in_size, out_start, out_size, roll_out) in enumerate(plan):
        if from_x:
            xin = x_ref[...]
        else:
            xin = buf_ref[pl.ds(in_start, in_size), :]
        acc = conv3x3(xin, w_refs[li], roll_out)
        y = jnp.maximum(acc + sh_refs[li][...], 0.0)          # folded-BN shift + ReLU
        buf_ref[pl.ds(out_start, out_size), :] = y.astype(buf_ref.dtype)

    s2 = buf_ref[pl.ds(s2_start, s2_rows), :]
    s2_ref[...] = s2
    # GAP(cat([x0, s2])) == [GAP(x0), GAP(s2)]; both live in VMEM already.
    gapx_ref[...] = jnp.mean(buf_ref[pl.ds(0, nin), :].astype(jnp.float32),
                             axis=1, keepdims=True)
    gaps2_ref[...] = jnp.mean(s2.astype(jnp.float32), axis=1, keepdims=True)


def clique_block_fused(x, bprep, H, W, stem_prep=None):
    """x: (N, Cx, H*W) bf16.  Returns (s2 (N,L*f,P) bf16, gap_x0 (N,nin) f32,
    gap_s2 (N,L*f) f32).  For block 1 pass stem_prep=(w9, shift); x is the raw image
    and the stem conv+BN+ReLU is fused in."""
    N, Cx, P = x.shape
    assert P == H * W
    if P % 128 != 0:
        # TODO(synk): pad the flattened spatial (lane) dim to 128 and mask instead.
        raise ValueError("H*W must be a multiple of 128 for the in-kernel lane roll")

    stage1, stage2 = bprep['stage1'], bprep['stage2']
    L = len(stage1)
    f = stage1[0][0].shape[1]          # filters
    nin = stage1[0][0].shape[2]        # clique-block input channels

    plan = []
    weight_args = []
    if stem_prep is not None:
        w9s, shs = stem_prep
        s_cout, s_cin = w9s.shape[1], w9s.shape[2]
        assert s_cout == nin and s_cin == Cx
        plan.append((True, 0, s_cin, 0, s_cout, s_cin >= s_cout))   # input-side roll
        weight_args += [w9s, shs]
        copy_x = False
    else:
        assert Cx == nin
        copy_x = True
    # Buffer layout: [x0 (nin)] [stage1 out_0..out_{L-1}] [stage2 out'_0..out'_{L-1}].
    for i, (w9, sh) in enumerate(stage1):
        cin = w9.shape[2]
        assert cin == nin + i * f
        plan.append((False, 0, cin, nin + i * f, f, True))
        weight_args += [w9, sh]
    for i, (w9, sh) in enumerate(stage2):
        cin = w9.shape[2]
        assert cin == (L - 1) * f
        plan.append((False, nin + (i + 1) * f, cin, nin + L * f + i * f, f, True))
        weight_args += [w9, sh]

    total_rows = nin + 2 * L * f
    s2_start, s2_rows = nin + L * f, L * f

    lane_shifts = tuple(_lane_roll_shift(dy * W + dx, P) for dy, dx in _TAPS)
    kernel = functools.partial(
        _fused_block_kernel, H=H, W=W, lane_shifts=lane_shifts, plan=tuple(plan),
        copy_x=copy_x, nin=nin, s2_start=s2_start, s2_rows=s2_rows)

    in_specs = [pl.BlockSpec((None, Cx, P), lambda n: (n, 0, 0))]
    for wa in weight_args:
        if wa.ndim == 3:
            in_specs.append(pl.BlockSpec(wa.shape, lambda n: (0, 0, 0)))
        else:
            in_specs.append(pl.BlockSpec(wa.shape, lambda n: (0, 0)))

    out_shapes = (jax.ShapeDtypeStruct((N, s2_rows, P), jnp.bfloat16),
                  jax.ShapeDtypeStruct((N, nin, 1), jnp.float32),
                  jax.ShapeDtypeStruct((N, s2_rows, 1), jnp.float32))
    out_specs = (pl.BlockSpec((None, s2_rows, P), lambda n: (n, 0, 0)),
                 pl.BlockSpec((None, nin, 1), lambda n: (n, 0, 0)),
                 pl.BlockSpec((None, s2_rows, 1), lambda n: (n, 0, 0)))

    s2, gapx, gaps2 = pl.pallas_call(
        kernel,
        out_shape=out_shapes,
        grid=(N,),
        in_specs=in_specs,
        out_specs=out_specs,
        scratch_shapes=[pltpu.VMEM((total_rows, P), jnp.bfloat16)],
        compiler_params=pltpu.CompilerParams(
            dimension_semantics=("parallel",),
            vmem_limit_bytes=32 * 1024 * 1024),
    )(x, *weight_args)
    return s2, gapx[:, :, 0], gaps2[:, :, 0]


# --------------------------------------------------------------------------
# Transition: 1x1 conv + BN + ReLU + 2x2/2 avg-pool (fused, lane-dense row chunks)
# --------------------------------------------------------------------------

def _transition_pool_kernel(x_ref, w_ref, shift_ref, pmat_ref, o_ref):
    """x: (Cin, CHUNK) bf16; w: (Cout, Cin) bf16; shift: (Cout,1) f32;
    pmat: (CHUNK, CHUNK//4) bf16; o: (Cout, CHUNK//4) bf16."""
    s = jnp.dot(w_ref[...], x_ref[...], preferred_element_type=jnp.float32)
    s = jnp.maximum(s + shift_ref[...], 0.0)
    # bf16 operands for the pooling matmul (0.25 is exact in bf16).
    o_ref[...] = jnp.dot(s.astype(jnp.bfloat16), pmat_ref[...],
                         preferred_element_type=jnp.float32).astype(o_ref.dtype)


def _pool_row_chunk(H, W):
    # Smallest even row-chunk whose input/output lane extents are 128-aligned.
    for tr in range(2, H, 2):
        if H % tr == 0 and (tr * W) % 512 == 0:
            return tr
    return H  # whole image (full-dim blocks are always legal)


@functools.lru_cache(maxsize=None)
def _pool_matrix(rows, W):
    """(rows*W, rows*W//4) bf16 matrix computing the 2x2/stride-2 average pool."""
    Wo = W // 2
    P = np.zeros((rows * W, (rows // 2) * Wo), np.float32)
    for p in range(rows * W):
        ry, x = p // W, p % W
        P[p, (ry // 2) * Wo + (x // 2)] = 0.25
    return jnp.asarray(P, dtype=jnp.bfloat16)


def transition_conv_pool(x, wmat, shift, H, W):
    """(N, Cin, H*W) bf16 -> (N, Cout, (H/2)*(W/2)) bf16."""
    N, Cin, P = x.shape
    Cout = wmat.shape[0]
    assert P == H * W and H % 2 == 0 and W % 2 == 0   # ceil_mode irrelevant (even dims)
    TR = _pool_row_chunk(H, W)
    chunk_in = TR * W
    chunk_out = chunk_in // 4
    n_chunks = H // TR
    pmat = _pool_matrix(TR, W)
    return pl.pallas_call(
        _transition_pool_kernel,
        out_shape=jax.ShapeDtypeStruct((N, Cout, (H // 2) * (W // 2)), jnp.bfloat16),
        grid=(N, n_chunks),
        in_specs=[
            pl.BlockSpec((None, Cin, chunk_in), lambda n, j: (n, 0, j)),
            pl.BlockSpec((Cout, Cin), lambda n, j: (0, 0)),
            pl.BlockSpec((Cout, 1), lambda n, j: (0, 0)),
            pl.BlockSpec((chunk_in, chunk_out), lambda n, j: (0, 0)),
        ],
        out_specs=pl.BlockSpec((None, Cout, chunk_out), lambda n, j: (n, 0, j)),
        compiler_params=pltpu.CompilerParams(
            dimension_semantics=("parallel", "parallel"),
            vmem_limit_bytes=32 * 1024 * 1024),
    )(x, wmat, shift, pmat)


# --------------------------------------------------------------------------
# Final linear layer
# --------------------------------------------------------------------------

def _linear_kernel(x_ref, w_ref, b_ref, o_ref):
    o_ref[...] = jnp.dot(x_ref[...], w_ref[...],
                         preferred_element_type=jnp.float32) + b_ref[...]


def linear_predict(x, w, b):
    N, F = x.shape
    C = w.shape[1]
    return pl.pallas_call(
        _linear_kernel,
        out_shape=jax.ShapeDtypeStruct((N, C), jnp.float32),
        grid=(1,),
        in_specs=[
            pl.BlockSpec((N, F), lambda i: (0, 0)),
            pl.BlockSpec((F, C), lambda i: (0, 0)),
            pl.BlockSpec((1, C), lambda i: (0, 0)),
        ],
        out_specs=pl.BlockSpec((N, C), lambda i: (0, 0)),
    )(x, w, b.reshape(1, C))


# --------------------------------------------------------------------------
# parameters (PyTorch-shaped) and one-time BN/weight folding
# --------------------------------------------------------------------------

def _normal(key, shape, std=0.01):
    return std * jax.random.normal(key, shape, dtype=jnp.float32)


def make_clique_block_params(key, nin, layers, filters):
    k = jax.random.split(key, 5)
    return dict(
        layers=layers, filters=filters, nin=nin,
        W0=_normal(k[0], (layers, filters, nin, 3, 3)),
        W=_normal(k[1], (layers * (layers - 1), filters, filters, 3, 3)),
        b=_normal(k[2], (2 * layers, filters)),
        gamma=_normal(k[3], (2 * layers, filters)),   # reset_parameters hits BN too
        beta=_normal(k[4], (2 * layers, filters)),
    )


def make_transition_params(key, nin, nout):
    k = jax.random.split(key, 2)
    return dict(
        w=_normal(k[0], (nout, nin, 1, 1), std=0.05),
        b=_normal(k[1], (nout,), std=0.05),
        gamma=jnp.ones((nout,), jnp.float32),
        beta=jnp.zeros((nout,), jnp.float32),
    )


def make_cliquenet_params(key, nin, num_classes, layers, filters):
    keys = jax.random.split(key, 10)
    lf = layers * filters
    blocks = [make_clique_block_params(keys[2], 64, layers, filters),
              make_clique_block_params(keys[3], lf, layers, filters),
              make_clique_block_params(keys[4], lf, layers, filters)]
    trans = [make_transition_params(keys[5 + i], lf, lf) for i in range(3)]
    # TODO(synk): the PyTorch reference sizes `predict` with 64 + 4*layers*filters for
    # the no-compression path, which mismatches the actually concatenated pooled
    # features (64 + 5*layers*filters); the predict layer here is sized to the real
    # dim so the forward is runnable.
    feature_size = (64 + lf) + 2 * lf + 2 * lf
    return dict(
        stem_w=_normal(keys[0], (64, nin, 3, 3), std=0.05),
        stem_b=_normal(keys[1], (64,), std=0.05),
        stem_gamma=jnp.ones((64,), jnp.float32),
        stem_beta=jnp.zeros((64,), jnp.float32),
        clique=blocks,
        transition=trans,
        pred_w=_normal(keys[8], (feature_size, num_classes), std=0.05),
        pred_b=_normal(keys[9], (num_classes,), std=0.05),
    )


def _fold_conv3x3(wc, bias, gamma, beta, running_mean=None, running_var=None):
    """(Cout,Cin,3,3) conv + eval BN -> (9,Cout,Cin) bf16 taps + (Cout,1) f32 shift."""
    cout, cin = wc.shape[0], wc.shape[1]
    rm = jnp.zeros((cout,), jnp.float32) if running_mean is None else running_mean
    rv = jnp.ones((cout,), jnp.float32) if running_var is None else running_var
    scale = gamma / jnp.sqrt(rv + BN_EPS)
    shift = beta + (bias - rm) * scale
    w9 = jnp.transpose(wc, (2, 3, 0, 1)).reshape(9, cout, cin) * scale[None, :, None]
    return w9.astype(jnp.bfloat16), shift.reshape(cout, 1).astype(jnp.float32)


def _fold_conv1x1(wc, bias, gamma, beta, running_mean=None, running_var=None):
    cout, cin = wc.shape[0], wc.shape[1]
    rm = jnp.zeros((cout,), jnp.float32) if running_mean is None else running_mean
    rv = jnp.ones((cout,), jnp.float32) if running_var is None else running_var
    scale = gamma / jnp.sqrt(rv + BN_EPS)
    shift = beta + (bias - rm) * scale
    wmat = wc.reshape(cout, cin) * scale[:, None]
    return wmat.astype(jnp.bfloat16), shift.reshape(cout, 1).astype(jnp.float32)


def prepare_clique_block(bp):
    """Concatenate + BN-fold every clique-layer weight ONCE (not per forward)."""
    L = bp['layers']
    W0, W, b, gamma, beta = bp['W0'], bp['W'], bp['b'], bp['gamma'], bp['beta']

    def c2i(j, i):
        assert j != i
        return j * (L - 1) + i - 1

    stage1 = []
    for i in range(L):
        wcat = W0[i] if i == 0 else jnp.concatenate(
            [W0[i]] + [W[c2i(j, i)] for j in range(i)], axis=1)
        stage1.append(_fold_conv3x3(wcat, b[i], gamma[i], beta[i]))
    stage2 = []
    from_layers = list(range(1, L))
    for i in range(L):
        wcat = jnp.concatenate([W[c2i(j, i)] for j in from_layers], axis=1)
        from_layers = from_layers[1:] + [(from_layers[-1] + 1) % L]
        stage2.append(_fold_conv3x3(wcat, b[L + i], gamma[L + i], beta[L + i]))
    return dict(stage1=stage1, stage2=stage2)


def prepare_params(params):
    _roll_matches_numpy()   # resolve the roll convention eagerly (outside jit)
    return dict(
        stem=_fold_conv3x3(params['stem_w'], params['stem_b'],
                           params['stem_gamma'], params['stem_beta']),
        clique=[prepare_clique_block(bp) for bp in params['clique']],
        transition=[_fold_conv1x1(tp['w'], tp['b'], tp['gamma'], tp['beta'])
                    for tp in params['transition']],
        pred_w=params['pred_w'],
        pred_b=params['pred_b'],
    )


# --------------------------------------------------------------------------
# model forward
# --------------------------------------------------------------------------

@jax.jit
def cliquenet_forward(prep, x_nchw):
    N, Cin, H, W = x_nchw.shape
    cur = x_nchw.reshape(N, Cin, H * W).astype(jnp.bfloat16)   # lanes = H*W
    feats = []
    h, w = H, W
    n_blocks = len(prep['clique'])
    for bi, bprep in enumerate(prep['clique']):
        stem = prep['stem'] if bi == 0 else None
        s2, gap_x0, gap_s2 = clique_block_fused(cur, bprep, h, w, stem_prep=stem)
        # feature = cat([x0, s2]); GAP(cat) == [GAP(x0), GAP(s2)] (fused in-kernel).
        feats.append(gap_x0)
        feats.append(gap_s2)
        if bi + 1 < n_blocks:
            twmat, tshift = prep['transition'][bi]
            cur = transition_conv_pool(s2, twmat, tshift, h, w)
            h, w = h // 2, w // 2
        # The last Transition's output is never used by the reference forward; skip it.

    feat = jnp.concatenate(feats, axis=1)                       # (N, 64 + 5*L*f) f32
    return linear_predict(feat, prep['pred_w'], prep['pred_b'])


# --------------------------------------------------------------------------
# main
# --------------------------------------------------------------------------

if __name__ == "__main__":
    key = jax.random.PRNGKey(0)
    kx, kp = jax.random.split(key)

    # Spatial size 64 keeps H*W a multiple of 128 (lane width) at every block
    # (64x64 -> 32x32 -> 16x16); filters=16 keeps bf16 sublane offsets 16-aligned.
    N, nin, H, W = 2, 4, 64, 64
    layers, filters, num_classes = 3, 16, 10

    x = jax.random.normal(kx, (N, nin, H, W), dtype=jnp.float32)   # NCHW like the reference
    params = make_cliquenet_params(kp, nin, num_classes, layers, filters)
    prep = prepare_params(params)

    logits = cliquenet_forward(prep, x)
    logits = jax.block_until_ready(logits)

    assert logits.shape == (N, num_classes)
    assert bool(jnp.all(jnp.isfinite(logits)))
    print("KERNEL_OK")
</pallas_src>

<mosaic_0001>
module attributes {stable_mosaic.version = 11 : i64} {
  func.func @_roll_probe_kernel(%arg0: memref<8x128xf32, #tpu.memory_space<vmem>>, %arg1: memref<8x128xf32, #tpu.memory_space<vmem>>) attributes {dimension_semantics = [], scalar_prefetch = 0 : i64, scratch_operands = 0 : i64, tpu.core_type = #tpu.core_type<tc>} {
    %c0 = arith.constant 0 : index
    %c0_0 = arith.constant 0 : index
    %0 = vector.load %arg0[%c0, %c0_0] : memref<8x128xf32, #tpu.memory_space<vmem>>, vector<8x128xf32>
    %c1_i32 = arith.constant 1 : i32
    %1 = tpu.dynamic_rotate %0 by %c1_i32 dim 1 : vector<8x128xf32>, i32 -> vector<8x128xf32>
    %c0_1 = arith.constant 0 : index
    %c0_2 = arith.constant 0 : index
    %2 = vector.load %arg1[%c0_1, %c0_2] : memref<8x128xf32, #tpu.memory_space<vmem>>, vector<8x128xf32>
    tpu.vector_store %arg1[%c0_1, %c0_2], %1 {strides = array<i32>} : memref<8x128xf32, #tpu.memory_space<vmem>>, vector<8x128xf32>,
    return
  }
}

</mosaic_0001>

<llo_original>
// kernel: tpu_custom_call.1
$region0: #{tpu_custom_call.1}
  #allocation0 [shape = 'u32[]', space=smem, size = 0x4, offset = 0x4, fixed_abs, tag = 'smem constant byte address 0x4 - core index']
  #allocation1 [shape = 'u32[72,128]{1,0:T(1,128)}', space=vmem, size = 0x9000, scoped, tag = 'internal scratch']
  %s0 = inlined_call_operand.hbm [shape: f32[8,128], index: 0, kind: input, shape index: {}]
  %s1 = inlined_call_operand.hbm [shape: f32[8,128], index: 1, kind: output, shape index: {}]
  %s2 = sld [smem:[#allocation0]]
  $region18: #{tpu_custom_call.1} parent=0
    _
  %s4 = ssub.s32 1, %s2
  %s5 = scalar_select 0, %s4, %s2
  $region1: #{tpu_custom_call.1} parent=0
    #allocation2 [shape = 'u8[4096]{0}', space=vmem, size = 0x1000, scoped, tag = 'input window, operand 0, single buffered']
    #allocation3 [shape = 's32[1]{0}', space=sflag, size = 0x4, scoped, tag = 'scoped memory for tpu_custom_call.1']
    #allocation4 [shape = 's32[1]{0}', space=sflag, size = 0x4, scoped, tag = 'scoped memory for tpu_custom_call.1']
    #allocation5 [shape = 'u8[4096]{0}', space=vmem, size = 0x1000, scoped, tag = 'output window, operand 0, single buffered']
    %6 = vsyncpa [#allocation3], 0
    %7 = vsyncpa [#allocation4], 0
    // Predicated region
    $region2: #{tpu_custom_call.1} parent=1 // pred_check
      _
    $region3: #{tpu_custom_call.1} parent=1 // pred_check_branch
      %9 = sbr.rel (0) target = $region5
    $region4: #{tpu_custom_call.1} parent=1 // pred_region
      %11 = vsyncadd [#allocation3], 0
      %s13 = sshll.u32 %s0, 4
      %s14 = int_to_ptr.hbm [resolvable:$true] %s13
      %s15 = sshll.u32 [#allocation2], 4
      %s16 = int_to_ptr.vmem [resolvable:$true] %s15
      %18 = dma.hbm_to_vmem [thread:$0]  %s14, 128, %s16, [#allocation3]
    $region5: #{tpu_custom_call.1} parent=1 // pred_fallthru
      _
    // Predicated region
    $region6: #{tpu_custom_call.1} parent=1 // pred_check
      _
    $region7: #{tpu_custom_call.1} parent=1 // pred_check_branch
      %20 = sbr.rel (0) target = $region9
    $region8: #{tpu_custom_call.1} parent=1 // pred_region
      %22 = dma.done [#allocation3], 128
    $region9: #{tpu_custom_call.1} parent=1 // pred_fallthru
      _
    %v23 = vld [vmem:[#allocation2] sm:$0xff]
    %24 = vrot.lane.b32.xlu0 %v23, 1
    %v25 = vpop.permute.xlu0 %24
    %26 = vst [vmem:[#allocation5] sm:$0xff] %v25
    // Predicated region
    $region10: #{tpu_custom_call.1} parent=1 // pred_check
      _
    $region11: #{tpu_custom_call.1} parent=1 // pred_check_branch
      %28 = sbr.rel (0) target = $region13
    $region12: #{tpu_custom_call.1} parent=1 // pred_region
      %30 = vsyncadd [#allocation4], 0
      %s32 = sshll.u32 [#allocation5], 4
      %s33 = int_to_ptr.vmem [resolvable:$true] %s32
      %s34 = sshll.u32 %s1, 4
      %s35 = int_to_ptr.hbm [resolvable:$true] %s34
      %37 = dma.vmem_to_hbm [thread:$0]  %s33, 128, %s35, [#allocation4]
    $region13: #{tpu_custom_call.1} parent=1 // pred_fallthru
      _
    // Predicated region
    $region14: #{tpu_custom_call.1} parent=1 // pred_check
      _
    $region15: #{tpu_custom_call.1} parent=1 // pred_check_branch
      %39 = sbr.rel (0) target = $region17
    $region16: #{tpu_custom_call.1} parent=1 // pred_region
      %41 = dma.done [#allocation4], 128
    $region17: #{tpu_custom_call.1} parent=1 // pred_fallthru
      _
    %42 = vsyncpa [#allocation3], 1
    %43 = vsyncpa [#allocation4], 1

</llo_original>
